<compile_context>
chip_gen: v6e
topology: v6e:2x2x1
jax: 0.10.0
libtpu: 0.0.40
codegen_flags: <defaults>
</compile_context>

<pallas_src>
import numpy as np
import jax
import jax.numpy as jnp
from jax.experimental import pallas as pl
from jax.experimental.pallas import tpu as pltpu


# ---------------------------------------------------------------------------
# Glue: build the (out, in) bicubic antialias resize matrix (PIL / torchvision
# antialias=True algorithm), composed with the center crop by row selection.
# ---------------------------------------------------------------------------
def _bicubic_filter(x, a=-0.5):
    x = np.abs(x)
    return np.where(
        x < 1.0,
        ((a + 2.0) * x - (a + 3.0)) * x * x + 1.0,
        np.where(x < 2.0, (((x - 5.0) * x + 8.0) * x - 4.0) * a, 0.0),
    )


def _resize_matrix(in_size, out_size):
    """Dense (out_size, in_size) antialiased bicubic interpolation matrix."""
    mat = np.zeros((out_size, in_size), dtype=np.float64)
    scale = in_size / out_size
    fscale = max(scale, 1.0)          # antialias=True
    support = 2.0 * fscale            # bicubic support = 2
    for j in range(out_size):
        center = (j + 0.5) * scale
        xmin = max(int(center - support + 0.5), 0)
        xmax = min(int(center + support + 0.5), in_size)
        xs = np.arange(xmin, xmax, dtype=np.float64)
        w = _bicubic_filter((xs - center + 0.5) / fscale)
        mat[j, xmin:xmax] = w / w.sum()
    return mat.astype(np.float32)


# ---------------------------------------------------------------------------
# Pallas kernel: one image (all C channels) per grid point.
# ---------------------------------------------------------------------------
def _make_kernel(C, w_first, compute_dtype):
    def kernel(scale_ref, bias_ref, ah_ref, awt_ref, x_ref, o_ref):
        ah = ah_ref[...]      # (S, H)  resize+crop matrix (rows)
        awt = awt_ref[...]    # (W, S)  resize+crop matrix (cols), transposed
        # Unrolled channel loop (C is tiny and static).
        for c in range(C):
            x = x_ref[c].astype(compute_dtype)                  # (H, W), uint8 -> compute dtype
            if w_first:
                # W is the longer dim: contract it first.
                y = jnp.dot(x, awt, preferred_element_type=jnp.float32)   # (H, S)
                y = jnp.dot(ah, y, preferred_element_type=jnp.float32)    # (S, S)
            else:
                # H is the longer (or equal) dim: contract it first.
                y = jnp.dot(ah, x, preferred_element_type=jnp.float32)    # (S, W)
                y = jnp.dot(y, awt, preferred_element_type=jnp.float32)   # (S, S)
            # torchvision resizes a uint8 tensor in float then rounds+clamps
            # back to uint8 before ConvertImageDtype.
            y = jnp.clip(jnp.round(y), 0.0, 255.0)
            # ConvertImageDtype(float) + Normalize(mean, std) fused into one FMA:
            #   (y/255 - mean) / std == y * (1/(255*std)) + (-mean/std)
            o_ref[c] = y * scale_ref[c] + bias_ref[c]
    return kernel


def clip_transform(x_u8, image_size, mean, std, *, use_bf16=False):
    """x_u8: (N, C, H, W) uint8 image batch. Returns (N, C, S, S) float32."""
    N, C, H, W = x_u8.shape
    S = image_size

    # torchvision Resize([size]): shorter side -> size, keep aspect ratio
    # (int() truncation matches torchvision's size computation).
    if W <= H:
        new_w, new_h = S, int(S * H / W)
    else:
        new_h, new_w = S, int(S * W / H)
    # torchvision CenterCrop offsets; crop-with-padding (crop larger than the
    # resized image) cannot happen for shorter-side-to-S resize.
    top = int(round((new_h - S) / 2.0))
    left = int(round((new_w - S) / 2.0))
    assert top >= 0 and left >= 0 and top + S <= new_h and left + S <= new_w

    compute_dtype = jnp.bfloat16 if use_bf16 else jnp.float32
    a_h = jnp.asarray(_resize_matrix(H, new_h)[top:top + S], compute_dtype)      # (S, H)
    a_wt = jnp.asarray(_resize_matrix(W, new_w)[left:left + S].T, compute_dtype)  # (W, S)

    mean_np = np.asarray(mean, np.float32)
    std_np = np.asarray(std, np.float32)
    scale = jnp.asarray(1.0 / (255.0 * std_np), jnp.float32)   # (C,)
    bias = jnp.asarray(-mean_np / std_np, jnp.float32)         # (C,)

    # Contract the longer image dimension first: fewer MXU FLOPs, smaller
    # intermediate (S*H*(W+S) vs S*W*(H+S)).
    w_first = W > H

    kernel = _make_kernel(C, w_first, compute_dtype)

    return pl.pallas_call(
        kernel,
        out_shape=jax.ShapeDtypeStruct((N, C, S, S), jnp.float32),
        grid=(N,),
        in_specs=[
            pl.BlockSpec(memory_space=pltpu.MemorySpace.SMEM),              # scale (C,)
            pl.BlockSpec(memory_space=pltpu.MemorySpace.SMEM),              # bias  (C,)
            pl.BlockSpec((S, H), lambda n: (0, 0)),                         # A_h
            pl.BlockSpec((W, S), lambda n: (0, 0)),                         # A_w^T
            pl.BlockSpec((pl.Squeezed(), C, H, W), lambda n: (n, 0, 0, 0)),  # x (uint8)
        ],
        out_specs=pl.BlockSpec((pl.Squeezed(), C, S, S), lambda n: (n, 0, 0, 0)),
        compiler_params=pltpu.CompilerParams(
            dimension_semantics=("parallel",)),
    )(scale, bias, a_h, a_wt, x_u8)


if __name__ == "__main__":
    key = jax.random.PRNGKey(0)
    N, C, H, W = 2, 3, 24, 32
    image_size = 16

    # CLIP normalization constants (module __init__ args mean/std).
    mean = jnp.array([0.48145466, 0.4578275, 0.40821073], jnp.float32)
    std = jnp.array([0.26862954, 0.26130258, 0.27577711], jnp.float32)

    # Deterministic synthetic "image" batch with uint8 values (NCHW, like
    # torchvision read_image).  PIL decoding itself is host-side glue.
    x_u8 = jax.random.randint(key, (N, C, H, W), 0, 256, dtype=jnp.int32).astype(jnp.uint8)

    out = clip_transform(x_u8, image_size, mean, std)   # f32 bit-exact path
    jax.block_until_ready(out)
    assert out.shape == (N, C, image_size, image_size) and out.dtype == jnp.float32
    assert bool(jnp.all(jnp.isfinite(out)))
    print("KERNEL_OK")
</pallas_src>

<mosaic_0001>
module attributes {stable_mosaic.version = 11 : i64} {
  func.func @kernel(%arg0: i32, %arg1: memref<3xf32, #tpu.memory_space<smem>>, %arg2: memref<3xf32, #tpu.memory_space<smem>>, %arg3: memref<16x24xf32, #tpu.memory_space<vmem>>, %arg4: memref<32x16xf32, #tpu.memory_space<vmem>>, %arg5: memref<1x3x24x32xi8, #tpu.memory_space<vmem>>, %arg6: memref<1x3x16x16xf32, #tpu.memory_space<vmem>>) attributes {dimension_semantics = [#tpu.dimension_semantics<parallel>], iteration_bounds = array<i64: 2>, scalar_prefetch = 0 : i64, scratch_operands = 0 : i64, tpu.core_type = #tpu.core_type<tc>, window_params = [{transform_indices = @transform_0, window_bounds = array<i64: 3>}, {transform_indices = @transform_1, window_bounds = array<i64: 3>}, {pipeline_mode = #tpu.pipeline_mode<synchronous>, transform_indices = @transform_2, window_bounds = array<i64: 16, 24>}, {pipeline_mode = #tpu.pipeline_mode<synchronous>, transform_indices = @transform_3, window_bounds = array<i64: 32, 16>}, {transform_indices = @transform_4, window_bounds = array<i64: 1, 3, 24, 32>}, {transform_indices = @transform_5, window_bounds = array<i64: 1, 3, 16, 16>}]} {
    %c0 = arith.constant 0 : index
    %c0_0 = arith.constant 0 : index
    %0 = vector.load %arg3[%c0, %c0_0] : memref<16x24xf32, #tpu.memory_space<vmem>>, vector<16x24xf32>
    %c0_1 = arith.constant 0 : index
    %c0_2 = arith.constant 0 : index
    %1 = vector.load %arg4[%c0_1, %c0_2] : memref<32x16xf32, #tpu.memory_space<vmem>>, vector<32x16xf32>
    %c0_3 = arith.constant 0 : index
    %c0_4 = arith.constant 0 : index
    %c0_5 = arith.constant 0 : index
    %c0_6 = arith.constant 0 : index
    %2 = vector.load %arg5[%c0_3, %c0_4, %c0_5, %c0_6] : memref<1x3x24x32xi8, #tpu.memory_space<vmem>>, vector<1x1x24x32xi8>
    %3 = vector.shape_cast %2 : vector<1x1x24x32xi8> to vector<24x32xi8>
    %4 = arith.uitofp %3 : vector<24x32xi8> to vector<24x32xf32>
    %cst = arith.constant dense<0.000000e+00> : vector<24x16xf32>
    %5 = tpu.matmul %4, %1, %cst {dimension_numbers = #tpu.dot_dimension_numbers<[1], [0], [0], [1], [0, 0, 1, 1], [], []>} : vector<24x32xf32>, vector<32x16xf32>, vector<24x16xf32> -> vector<24x16xf32>
    %cst_7 = arith.constant dense<0.000000e+00> : vector<16x16xf32>
    %6 = tpu.matmul %0, %5, %cst_7 {dimension_numbers = #tpu.dot_dimension_numbers<[1], [0], [0], [1], [0, 0, 1, 1], [], []>} : vector<16x24xf32>, vector<24x16xf32>, vector<16x16xf32> -> vector<16x16xf32>
    %7 = math.roundeven %6 : vector<16x16xf32>
    %cst_8 = arith.constant 0.000000e+00 : f32
    %cst_9 = arith.constant 2.550000e+02 : f32
    %8 = vector.broadcast %cst_8 : f32 to vector<16x16xf32>
    %9 = arith.maximumf %8, %7 : vector<16x16xf32>
    %10 = vector.broadcast %cst_9 : f32 to vector<16x16xf32>
    %11 = arith.minimumf %10, %9 : vector<16x16xf32>
    %c0_10 = arith.constant 0 : index
    %12 = memref.load %arg1[%c0_10] : memref<3xf32, #tpu.memory_space<smem>>
    %13 = vector.broadcast %12 : f32 to vector<16x16xf32>
    %14 = arith.mulf %11, %13 : vector<16x16xf32>
    %c0_11 = arith.constant 0 : index
    %15 = memref.load %arg2[%c0_11] : memref<3xf32, #tpu.memory_space<smem>>
    %16 = vector.broadcast %15 : f32 to vector<16x16xf32>
    %17 = arith.addf %14, %16 : vector<16x16xf32>
    %c0_12 = arith.constant 0 : index
    %c0_13 = arith.constant 0 : index
    %c0_14 = arith.constant 0 : index
    %c0_15 = arith.constant 0 : index
    %18 = vector.load %arg6[%c0_12, %c0_13, %c0_14, %c0_15] : memref<1x3x16x16xf32, #tpu.memory_space<vmem>>, vector<1x1x16x16xf32>
    %19 = vector.shape_cast %18 : vector<1x1x16x16xf32> to vector<16x16xf32>
    %20 = vector.shape_cast %17 : vector<16x16xf32> to vector<1x1x16x16xf32>
    tpu.vector_store %arg6[%c0_12, %c0_13, %c0_14, %c0_15], %20 {strides = array<i32>} : memref<1x3x16x16xf32, #tpu.memory_space<vmem>>, vector<1x1x16x16xf32>,
    %c0_16 = arith.constant 0 : index
    %c1 = arith.constant 1 : index
    %c0_17 = arith.constant 0 : index
    %c0_18 = arith.constant 0 : index
    %21 = vector.load %arg5[%c0_16, %c1, %c0_17, %c0_18] : memref<1x3x24x32xi8, #tpu.memory_space<vmem>>, vector<1x1x24x32xi8>
    %22 = vector.shape_cast %21 : vector<1x1x24x32xi8> to vector<24x32xi8>
    %23 = arith.uitofp %22 : vector<24x32xi8> to vector<24x32xf32>
    %cst_19 = arith.constant dense<0.000000e+00> : vector<24x16xf32>
    %24 = tpu.matmul %23, %1, %cst_19 {dimension_numbers = #tpu.dot_dimension_numbers<[1], [0], [0], [1], [0, 0, 1, 1], [], []>} : vector<24x32xf32>, vector<32x16xf32>, vector<24x16xf32> -> vector<24x16xf32>
    %cst_20 = arith.constant dense<0.000000e+00> : vector<16x16xf32>
    %25 = tpu.matmul %0, %24, %cst_20 {dimension_numbers = #tpu.dot_dimension_numbers<[1], [0], [0], [1], [0, 0, 1, 1], [], []>} : vector<16x24xf32>, vector<24x16xf32>, vector<16x16xf32> -> vector<16x16xf32>
    %26 = math.roundeven %25 : vector<16x16xf32>
    %cst_21 = arith.constant 0.000000e+00 : f32
    %cst_22 = arith.constant 2.550000e+02 : f32
    %27 = vector.broadcast %cst_21 : f32 to vector<16x16xf32>
    %28 = arith.maximumf %27, %26 : vector<16x16xf32>
    %29 = vector.broadcast %cst_22 : f32 to vector<16x16xf32>
    %30 = arith.minimumf %29, %28 : vector<16x16xf32>
    %c1_23 = arith.constant 1 : index
    %31 = memref.load %arg1[%c1_23] : memref<3xf32, #tpu.memory_space<smem>>
    %32 = vector.broadcast %31 : f32 to vector<16x16xf32>
    %33 = arith.mulf %30, %32 : vector<16x16xf32>
    %c1_24 = arith.constant 1 : index
    %34 = memref.load %arg2[%c1_24] : memref<3xf32, #tpu.memory_space<smem>>
    %35 = vector.broadcast %34 : f32 to vector<16x16xf32>
    %36 = arith.addf %33, %35 : vector<16x16xf32>
    %c0_25 = arith.constant 0 : index
    %c1_26 = arith.constant 1 : index
    %c0_27 = arith.constant 0 : index
    %c0_28 = arith.constant 0 : index
    %37 = vector.load %arg6[%c0_25, %c1_26, %c0_27, %c0_28] : memref<1x3x16x16xf32, #tpu.memory_space<vmem>>, vector<1x1x16x16xf32>
    %38 = vector.shape_cast %37 : vector<1x1x16x16xf32> to vector<16x16xf32>
    %39 = vector.shape_cast %36 : vector<16x16xf32> to vector<1x1x16x16xf32>
    tpu.vector_store %arg6[%c0_25, %c1_26, %c0_27, %c0_28], %39 {strides = array<i32>} : memref<1x3x16x16xf32, #tpu.memory_space<vmem>>, vector<1x1x16x16xf32>,
    %c0_29 = arith.constant 0 : index
    %c2 = arith.constant 2 : index
    %c0_30 = arith.constant 0 : index
    %c0_31 = arith.constant 0 : index
    %40 = vector.load %arg5[%c0_29, %c2, %c0_30, %c0_31] : memref<1x3x24x32xi8, #tpu.memory_space<vmem>>, vector<1x1x24x32xi8>
    %41 = vector.shape_cast %40 : vector<1x1x24x32xi8> to vector<24x32xi8>
    %42 = arith.uitofp %41 : vector<24x32xi8> to vector<24x32xf32>
    %cst_32 = arith.constant dense<0.000000e+00> : vector<24x16xf32>
    %43 = tpu.matmul %42, %1, %cst_32 {dimension_numbers = #tpu.dot_dimension_numbers<[1], [0], [0], [1], [0, 0, 1, 1], [], []>} : vector<24x32xf32>, vector<32x16xf32>, vector<24x16xf32> -> vector<24x16xf32>
    %cst_33 = arith.constant dense<0.000000e+00> : vector<16x16xf32>
    %44 = tpu.matmul %0, %43, %cst_33 {dimension_numbers = #tpu.dot_dimension_numbers<[1], [0], [0], [1], [0, 0, 1, 1], [], []>} : vector<16x24xf32>, vector<24x16xf32>, vector<16x16xf32> -> vector<16x16xf32>
    %45 = math.roundeven %44 : vector<16x16xf32>
    %cst_34 = arith.constant 0.000000e+00 : f32
    %cst_35 = arith.constant 2.550000e+02 : f32
    %46 = vector.broadcast %cst_34 : f32 to vector<16x16xf32>
    %47 = arith.maximumf %46, %45 : vector<16x16xf32>
    %48 = vector.broadcast %cst_35 : f32 to vector<16x16xf32>
    %49 = arith.minimumf %48, %47 : vector<16x16xf32>
    %c2_36 = arith.constant 2 : index
    %50 = memref.load %arg1[%c2_36] : memref<3xf32, #tpu.memory_space<smem>>
    %51 = vector.broadcast %50 : f32 to vector<16x16xf32>
    %52 = arith.mulf %49, %51 : vector<16x16xf32>
    %c2_37 = arith.constant 2 : index
    %53 = memref.load %arg2[%c2_37] : memref<3xf32, #tpu.memory_space<smem>>
    %54 = vector.broadcast %53 : f32 to vector<16x16xf32>
    %55 = arith.addf %52, %54 : vector<16x16xf32>
    %c0_38 = arith.constant 0 : index
    %c2_39 = arith.constant 2 : index
    %c0_40 = arith.constant 0 : index
    %c0_41 = arith.constant 0 : index
    %56 = vector.load %arg6[%c0_38, %c2_39, %c0_40, %c0_41] : memref<1x3x16x16xf32, #tpu.memory_space<vmem>>, vector<1x1x16x16xf32>
    %57 = vector.shape_cast %56 : vector<1x1x16x16xf32> to vector<16x16xf32>
    %58 = vector.shape_cast %55 : vector<16x16xf32> to vector<1x1x16x16xf32>
    tpu.vector_store %arg6[%c0_38, %c2_39, %c0_40, %c0_41], %58 {strides = array<i32>} : memref<1x3x16x16xf32, #tpu.memory_space<vmem>>, vector<1x1x16x16xf32>,
    return
  }
  func.func @transform_0(%arg0: i32) -> i32 {
    %c0_i32 = arith.constant 0 : i32
    %c0_i32_0 = arith.constant 0 : i32
    return %c0_i32 : i32
  }
  func.func @transform_1(%arg0: i32) -> i32 {
    %c0_i32 = arith.constant 0 : i32
    %c0_i32_0 = arith.constant 0 : i32
    return %c0_i32 : i32
  }
  func.func @transform_2(%arg0: i32) -> (i32, i32) {
    %c0_i32 = arith.constant 0 : i32
    %c0_i32_0 = arith.constant 0 : i32
    %c0_i32_1 = arith.constant 0 : i32
    return %c0_i32, %c0_i32_0 : i32, i32
  }
  func.func @transform_3(%arg0: i32) -> (i32, i32) {
    %c0_i32 = arith.constant 0 : i32
    %c0_i32_0 = arith.constant 0 : i32
    %c0_i32_1 = arith.constant 0 : i32
    return %c0_i32, %c0_i32_0 : i32, i32
  }
  func.func @transform_4(%arg0: i32) -> (i32, i32, i32, i32) {
    %c0_i32 = arith.constant 0 : i32
    %c0_i32_0 = arith.constant 0 : i32
    %c0_i32_1 = arith.constant 0 : i32
    %c0_i32_2 = arith.constant 0 : i32
    return %arg0, %c0_i32, %c0_i32_0, %c0_i32_1 : i32, i32, i32, i32
  }
  func.func @transform_5(%arg0: i32) -> (i32, i32, i32, i32) {
    %c0_i32 = arith.constant 0 : i32
    %c0_i32_0 = arith.constant 0 : i32
    %c0_i32_1 = arith.constant 0 : i32
    %c0_i32_2 = arith.constant 0 : i32
    return %arg0, %c0_i32, %c0_i32_0, %c0_i32_1 : i32, i32, i32, i32
  }
}

</mosaic_0001>

<llo_original>
// kernel: tpu_custom_call.1
$region0: #{tpu_custom_call.1}
  #allocation0 [shape = 'u32[]', space=smem, size = 0x4, offset = 0x4, fixed_abs, tag = 'smem constant byte address 0x4 - core index']
  #allocation1 [shape = 'u32[144,128]{1,0:T(1,128)}', space=vmem, size = 0x12000, scoped, tag = 'internal scratch']
  %s0 = inlined_call_operand.vmem [shape: f32[3], index: 0, kind: input, shape index: {}]
  %s1 = inlined_call_operand.vmem [shape: f32[3], index: 1, kind: input, shape index: {}]
  %s2 = inlined_call_operand.vmem [shape: f32[16,24], index: 2, kind: input, shape index: {}]
  %s3 = inlined_call_operand.vmem [shape: f32[32,16], index: 3, kind: input, shape index: {}]
  %s4 = inlined_call_operand.vmem [shape: u8[2,3,24,32], index: 4, kind: input, shape index: {}]
  %s5 = inlined_call_operand.hbm [shape: f32[2,3,16,16], index: 5, kind: output, shape index: {}]
  %s6 = sld [smem:[#allocation0]]
  $region61: #{tpu_custom_call.1} parent=0
    _
  %s8 = ssub.s32 1, %s6
  %s9 = scalar_select 0, %s8, %s6
  $region1: #{tpu_custom_call.1} parent=0
    #allocation2 [shape = 'u8[512]{0}', space=smem, size = 0x200, scoped, tag = 'input window, operand 0, single buffered']
    #allocation3 [shape = 's32[2]{0}', space=sflag, size = 0x8, scoped, tag = 'scoped memory for tpu_custom_call.1']
    #allocation4 [shape = 's32[2]{0}', space=sflag, size = 0x8, scoped, tag = 'scoped memory for tpu_custom_call.1']
    #allocation5 [shape = 'u8[512]{0}', space=smem, size = 0x200, scoped, tag = 'input window, operand 1, single buffered']
    #allocation6 [shape = 's32[1]{0}', space=sflag, size = 0x4, scoped, tag = 'scoped memory for tpu_custom_call.1']
    #allocation7 [shape = 'u8[49152]{0}', space=vmem, size = 0xc000, scoped, tag = 'output window, operand 0']
    %10 = vsyncpa [#allocation4], 0
    %11 = vsyncpa [#allocation6], 0
    %12 = vsyncpa [#allocation3], 0
    %s13 = scalar_lea.sflag [#allocation3], 1
    %14 = vsyncpa %s13, 0
    loop: start=0, step=1, limit=4
    $region2: #{tpu_custom_call.1} parent=1 // loop_pre_header
      _
    $region3: #{tpu_custom_call.1} parent=1 // loop_header
      %s16 = sphi 0, %s20
      %p17 = scmp.ge.s32.totalorder %s16, 4
      %s24 = sphi 0, %s24
      %s26 = sphi 0, %s24
      %s27 = sphi 0, %s26
      %s41 = sphi 0, %s27
      %s45 = sphi 0, %s45
      %s47 = sphi 0, %s45
      %s48 = sphi 0, %s47
      %s62 = sphi 0, %s48
      %s66 = sphi 0, %s66
      %s68 = sphi 0, %s66
      %s69 = sphi 0, %s68
      %s83 = sphi 0, %s69
      %s87 = sphi 0, %s87
      %s89 = sphi 0, %s87
      %s90 = sphi 0, %s89
      %s104 = sphi 0, %s90
      %s110 = sphi 0, %s112
      %s113 = sphi 0, %s110
      %s114 = sphi 0, %s113
      %s130 = sphi 0, %s114
      %s136 = sphi 0, %s138
      %s139 = sphi 0, %s136
      %s140 = sphi 0, %s139
      %s156 = sphi 0, %s140
    $region4: #{tpu_custom_call.1} parent=1 // loop_header_branch
      %19 = sbr.rel (%p17) target = $region8
    $region5: #{tpu_custom_call.1} parent=1 // loop_body
      %s21 = ssub.s32 %s16, 1
      %s22 = ssub.s32 %s16, 2
      %s23 = sadd.s32 %s16, 1
      %s25 = sadd.s32 %s24, 1
      %p28 = scmp.eq.s32.totalorder %s16, 1
      %p29 = scmp.ne.s32.totalorder %s24, %s26
      %p30 = scmp.eq.s32.totalorder %s16, 0
      %p31 = por %p29, %p30
      %p32 = scmp.ne.s32.totalorder %s24, %s26
      %p33 = scmp.eq.s32.totalorder %s21, 1
      %p34 = por %p32, %p33
      %p35 = scmp.ne.s32.totalorder %s26, %s27
      %p36 = scmp.eq.s32.totalorder %s21, 0
      %p37 = por %p35, %p36
      %p38 = scmp.ne.s32.totalorder %s26, %s27
      %p39 = scmp.eq.s32.totalorder %s22, 1
      %p40 = por %p38, %p39
      %p42 = scmp.ne.s32.totalorder %s27, %s41
      %p43 = scmp.eq.s32.totalorder %s22, 0
      %p44 = por %p42, %p43
      %s46 = sadd.s32 %s45, 1
      %p49 = scmp.eq.s32.totalorder %s16, 1
      %p50 = scmp.ne.s32.totalorder %s45, %s47
      %p51 = scmp.eq.s32.totalorder %s16, 0
      %p52 = por %p50, %p51
      %p53 = scmp.ne.s32.totalorder %s45, %s47
      %p54 = scmp.eq.s32.totalorder %s21, 1
      %p55 = por %p53, %p54
      %p56 = scmp.ne.s32.totalorder %s47, %s48
      %p57 = scmp.eq.s32.totalorder %s21, 0
      %p58 = por %p56, %p57
      %p59 = scmp.ne.s32.totalorder %s47, %s48
      %p60 = scmp.eq.s32.totalorder %s22, 1
      %p61 = por %p59, %p60
      %p63 = scmp.ne.s32.totalorder %s48, %s62
      %p64 = scmp.eq.s32.totalorder %s22, 0
      %p65 = por %p63, %p64
      %s67 = sadd.s32 %s66, 1
      %p70 = scmp.eq.s32.totalorder %s16, 1
      %p71 = scmp.ne.s32.totalorder %s66, %s68
      %p72 = scmp.eq.s32.totalorder %s16, 0
      %p73 = por %p71, %p72
      %p74 = scmp.ne.s32.totalorder %s66, %s68
      %p75 = scmp.eq.s32.totalorder %s21, 1
      %p76 = por %p74, %p75
      %p77 = scmp.ne.s32.totalorder %s68, %s69
      %p78 = scmp.eq.s32.totalorder %s21, 0
      %p79 = por %p77, %p78
      %p80 = scmp.ne.s32.totalorder %s68, %s69
      %p81 = scmp.eq.s32.totalorder %s22, 1
      %p82 = por %p80, %p81
      %p84 = scmp.ne.s32.totalorder %s69, %s83
      %p85 = scmp.eq.s32.totalorder %s22, 0
      %p86 = por %p84, %p85
      %s88 = sadd.s32 %s87, 1
      %p91 = scmp.eq.s32.totalorder %s16, 1
      %p92 = scmp.ne.s32.totalorder %s87, %s89
      %p93 = scmp.eq.s32.totalorder %s16, 0
      %p94 = por %p92, %p93
      %p95 = scmp.ne.s32.totalorder %s87, %s89
      %p96 = scmp.eq.s32.totalorder %s21, 1
      %p97 = por %p95, %p96
      %p98 = scmp.ne.s32.totalorder %s89, %s90
      %p99 = scmp.eq.s32.totalorder %s21, 0
      %p100 = por %p98, %p99
      %p101 = scmp.ne.s32.totalorder %s89, %s90
      %p102 = scmp.eq.s32.totalorder %s22, 1
      %p103 = por %p101, %p102
      %p105 = scmp.ne.s32.totalorder %s90, %s104
      %p106 = scmp.eq.s32.totalorder %s22, 0
      %p107 = por %p105, %p106
      %s108 = ssub.s32 %s16, %s23
      %p109 = scmp.eq.s32.totalorder %s108, 0
      %s111 = sadd.s32 %s110, 1
      %s112 = scalar_select %p109, %s110, %s111
      %p115 = pneg %p109
      %p116 = scmp.eq.s32.totalorder %s16, 1
      %p117 = por %p115, %p116
      %p118 = scmp.ne.s32.totalorder %s110, %s113
      %p119 = scmp.eq.s32.totalorder %s16, 0
      %p120 = por %p118, %p119
      %p121 = scmp.ne.s32.totalorder %s110, %s113
      %p122 = scmp.eq.s32.totalorder %s21, 1
      %p123 = por %p121, %p122
      %p124 = scmp.ne.s32.totalorder %s113, %s114
      %p125 = scmp.eq.s32.totalorder %s21, 0
      %p126 = por %p124, %p125
      %p127 = scmp.ne.s32.totalorder %s113, %s114
      %p128 = scmp.eq.s32.totalorder %s22, 1
      %p129 = por %p127, %p128
      %p131 = scmp.ne.s32.totalorder %s114, %s130
      %p132 = scmp.eq.s32.totalorder %s22, 0
      %p133 = por %p131, %p132
      %s134 = ssub.s32 %s16, %s23
      %p135 = scmp.eq.s32.totalorder %s134, 0
      %s137 = sadd.s32 %s136, 1
      %s138 = scalar_select %p135, %s136, %s137
      %p141 = pneg %p135
      %p142 = scmp.eq.s32.totalorder %s16, 1
      %p143 = por %p141, %p142
      %p144 = scmp.ne.s32.totalorder %s136, %s139
      %p145 = scmp.eq.s32.totalorder %s16, 0
      %p146 = por %p144, %p145
      %p147 = scmp.ne.s32.totalorder %s136, %s139
      %p148 = scmp.eq.s32.totalorder %s21, 1
      %p149 = por %p147, %p148
      %p150 = scmp.ne.s32.totalorder %s139, %s140
      %p151 = scmp.eq.s32.totalorder %s21, 0
      %p152 = por %p150, %p151
      %p153 = scmp.ne.s32.totalorder %s139, %s140
      %p154 = scmp.eq.s32.totalorder %s22, 1
      %p155 = por %p153, %p154
      %p157 = scmp.ne.s32.totalorder %s140, %s156
      %p158 = scmp.eq.s32.totalorder %s22, 0
      %p159 = por %p157, %p158
      %p160 = scmp.le.s32.totalorder 1, %s16
      %p161 = scmp.lt.s32.totalorder %s16, 3
      %p162 = pnand %p160, %p161
      %p163 = pneg %p162
      // Predicated region
      $region9: #{tpu_custom_call.1} parent=5 // pred_check
        _
      $region10: #{tpu_custom_call.1} parent=5 // pred_check_branch
        %165 = sbr.rel (%p162) target = $region12
      $region11: #{tpu_custom_call.1} parent=5 // pred_region
        %s166 = ssub.s32 %s16, 1
        // Predicated region
        $region13: #{tpu_custom_call.1} parent=11 // pred_check
          %p167 = pneg %p37
        $region14: #{tpu_custom_call.1} parent=11 // pred_check_branch
          %169 = sbr.rel (%p167) target = $region16
        $region15: #{tpu_custom_call.1} parent=11 // pred_region
          %s171 = ssub.s32 16, 16
          %172 = vsyncadd [#allocation4], %s171
          %s174 = sshll.u32 %s0, 4
          %s175 = int_to_ptr.vmem [resolvable:$true] %s174
          %177 = dma.vmem_to_smem %s175, 16, [#allocation2], [#allocation4]
        $region16: #{tpu_custom_call.1} parent=11 // pred_fallthru
          _
        // Predicated region
        $region17: #{tpu_custom_call.1} parent=11 // pred_check
          %p178 = pneg %p58
        $region18: #{tpu_custom_call.1} parent=11 // pred_check_branch
          %180 = sbr.rel (%p178) target = $region20
        $region19: #{tpu_custom_call.1} parent=11 // pred_region
          %s182 = ssub.s32 16, 16
          %183 = vsyncadd [#allocation6], %s182
          %s185 = sshll.u32 %s1, 4
          %s186 = int_to_ptr.vmem [resolvable:$true] %s185
          %188 = dma.vmem_to_smem %s186, 16, [#allocation5], [#allocation6]
        $region20: #{tpu_custom_call.1} parent=11 // pred_fallthru
          _
        // Predicated region
        $region21: #{tpu_custom_call.1} parent=11 // pred_check
          %p189 = pneg %p79
        $region22: #{tpu_custom_call.1} parent=11 // pred_check_branch
          %191 = sbr.rel (%p189) target = $region24
        $region23: #{tpu_custom_call.1} parent=11 // pred_region
          _
        $region24: #{tpu_custom_call.1} parent=11 // pred_fallthru
          _
        // Predicated region
        $region25: #{tpu_custom_call.1} parent=11 // pred_check
          %p192 = pneg %p100
        $region26: #{tpu_custom_call.1} parent=11 // pred_check_branch
          %194 = sbr.rel (%p192) target = $region28
        $region27: #{tpu_custom_call.1} parent=11 // pred_region
          _
        $region28: #{tpu_custom_call.1} parent=11 // pred_fallthru
          _
      $region12: #{tpu_custom_call.1} parent=5 // pred_fallthru
        _
      %p195 = scmp.lt.s32.totalorder %s16, 2
      // Predicated region
      $region29: #{tpu_custom_call.1} parent=5 // pred_check
        %p196 = pneg %p195
      $region30: #{tpu_custom_call.1} parent=5 // pred_check_branch
        %198 = sbr.rel (%p196) target = $region32
      $region31: #{tpu_custom_call.1} parent=5 // pred_region
        // Predicated region
        $region33: #{tpu_custom_call.1} parent=31 // pred_check
          %p199 = pneg %p120
        $region34: #{tpu_custom_call.1} parent=31 // pred_check_branch
          %201 = sbr.rel (%p199) target = $region36
        $region35: #{tpu_custom_call.1} parent=31 // pred_region
          %p202 = scmp.lt.s32.totalorder %s16, 1
          %s203 = scalar_select %p202, %s16, 1
          %s204 = smul.addr %s203, 9
          %s205 = smul.addr %s204, 2
          %s206 = scalar_lea.vmem %s4, %s205
        $region36: #{tpu_custom_call.1} parent=31 // pred_fallthru
          _
      $region32: #{tpu_custom_call.1} parent=5 // pred_fallthru
        _
      %p207 = scmp.le.s32.totalorder 1, %s16
      %p208 = scmp.lt.s32.totalorder %s16, 3
      %p209 = pnand %p207, %p208
      %p210 = pneg %p209
      // Predicated region
      $region37: #{tpu_custom_call.1} parent=5 // pred_check
        _
      $region38: #{tpu_custom_call.1} parent=5 // pred_check_branch
        %212 = sbr.rel (%p209) target = $region40
      $region39: #{tpu_custom_call.1} parent=5 // pred_region
        %s213 = ssub.s32 %s16, 1
        // Predicated region
        $region41: #{tpu_custom_call.1} parent=39 // pred_check
          %p214 = pneg %p37
        $region42: #{tpu_custom_call.1} parent=39 // pred_check_branch
          %216 = sbr.rel (%p214) target = $region44
        $region43: #{tpu_custom_call.1} parent=39 // pred_region
          %217 = dma.done [#allocation4], 16
        $region44: #{tpu_custom_call.1} parent=39 // pred_fallthru
          _
        // Predicated region
        $region45: #{tpu_custom_call.1} parent=39 // pred_check
          %p218 = pneg %p58
        $region46: #{tpu_custom_call.1} parent=39 // pred_check_branch
          %220 = sbr.rel (%p218) target = $region48
        $region47: #{tpu_custom_call.1} parent=39 // pred_region
          %221 = dma.done [#allocation6], 16
        $region48: #{tpu_custom_call.1} parent=39 // pred_fallthru
          _
        %222 = sfence
        %p223 = pneg %p37
        %p224 = pneg %p34
        %p225 = pneg %p58
        %p226 = pneg %p55
        %p227 = pneg %p79
        %p228 = pneg %p76
        %p229 = pneg %p100
        %p230 = pneg %p97
        %p231 = scmp.lt.s32.totalorder %s21, 1
        %s232 = scalar_select %p231, %s21, 1
        %s233 = smul.addr %s232, 9
        %s234 = smul.addr %s233, 2
        %s235 = scalar_lea.vmem %s4, %s234
        %p236 = pneg %p126
        %p237 = pneg %p123
        %p238 = pneg %p152
        %p239 = pneg %p149
        %s240 = sand.u32 %s139, 1
        %s241 = scalar_lea.sflag [#allocation3], %s240
        %s242 = sand.u32 %s139, 1
        %s243 = smul.addr %s242, 48
        %s244 = scalar_lea.vmem [#allocation7], %s243
        %p245 = scmp.lt.s32.totalorder %s21, 1
        %s246 = scalar_select %p245, %s21, 1
        %s247 = smul.addr %s246, 9
        %s248 = smul.addr %s247, 2
        %s249 = scalar_lea.vmem %s4, %s248
        %v250 = vld [vmem:[%s2] sm:$0xff]
        %v251 = vld [vmem:[%s2 + $0x8] sm:$0xff]
        %v252 = vld [vmem:[%s3] sm:$0xff]
        %v253 = vld [vmem:[%s3 + $0x8] sm:$0xff]
        %v254 = vld [vmem:[%s3 + $0x10] sm:$0xff]
        %v255 = vld [vmem:[%s3 + $0x18] sm:$0xff]
        %v256 = vld [vmem:[%s249] sm:$0x3]
        %v257 = vld [vmem:[%s249 + $0x2] sm:$0x3]
        %v258 = vld [vmem:[%s249 + $0x4] sm:$0x3]
        %v259 = vunpack.c.0.s8 %v256
        %v260 = vunpack.c.0.s8 %v257
        %v261 = vunpack.c.0.s8 %v258
        %v262 = vand.u32 %v259, 255
        %v263 = vand.u32 %v260, 255
        %v264 = vand.u32 %v261, 255
        %v265 = vcvt.s32.f32 %v262
        %v266 = vcvt.s32.f32 %v263
        %v267 = vcvt.s32.f32 %v264
        %vm268 = vcmask 261120
        %v270 = vsel %vm268, %v265, 0
        %v273 = vsel %vm268, %v266, 0
        %v276 = vsel %vm268, %v267, 0
        %278 = vmatprep.subr.mxu0 0.0
        %279 = vmatpush1.msra.mxu0 0.0
        %280 = vmatprep.subr.mxu0 0.0
        %281 = vmatpush1.msra.mxu0 0.0
        %282 = vmatprep.subr.mxu0 0.0
        %283 = vmatpush1.msra.mxu0 0.0
        %284 = vmatprep.subr.mxu0 0.0
        %285 = vmatpush1.msra.mxu0 0.0
        %286 = vmatprep.subr.mxu0 0.0
        %287 = vmatpush1.msra.mxu0 0.0
        %288 = vmatprep.subr.mxu0 0.0
        %289 = vmatpush1.msra.mxu0 0.0
        %290 = vmatprep.subr.mxu0 0.0
        %291 = vmatpush1.msra.mxu0 0.0
        %292 = vmatprep.subr.mxu0 0.0
        %293 = vmatpush1.msra.mxu0 0.0
        %294 = vmatprep.subr.mxu0 0.0
        %295 = vmatpush1.msra.mxu0 0.0
        %296 = vmatprep.subr.mxu0 0.0
        %297 = vmatpush1.msra.mxu0 0.0
        %298 = vmatprep.subr.mxu0 0.0
        %299 = vmatpush1.msra.mxu0 0.0
        %300 = vmatprep.subr.mxu0 0.0
        %301 = vmatpush1.msra.mxu0 0.0
        %302 = vmatprep.subr.mxu0 0.0
        %303 = vmatpush1.msra.mxu0 %v255
        %304 = vmatprep.subr.mxu0 0.0
        %305 = vmatpush1.msra.mxu0 %v254
        %306 = vmatprep.subr.mxu0 0.0
        %307 = vmatpush1.msra.mxu0 %v253
        %308 = vmatprep.subr.mxu0 0.0
        %309 = vmatpush1.msra.mxu0 %v252
        %310 = vmatprep.subr.mxu0 0.0
        %311 = vmatpush2.msra.mxu0 0.0
        %312 = vmatprep.subr.mxu0 0.0
        %313 = vmatpush2.msra.mxu0 0.0
        %314 = vmatprep.subr.mxu0 0.0
        %315 = vmatpush2.msra.mxu0 0.0
        %316 = vmatprep.subr.mxu0 0.0
        %317 = vmatpush2.msra.mxu0 0.0
        %318 = vmatprep.subr.mxu0 0.0
        %319 = vmatpush2.msra.mxu0 0.0
        %320 = vmatprep.subr.mxu0 0.0
        %321 = vmatpush2.msra.mxu0 0.0
        %322 = vmatprep.subr.mxu0 0.0
        %323 = vmatpush2.msra.mxu0 0.0
        %324 = vmatprep.subr.mxu0 0.0
        %325 = vmatpush2.msra.mxu0 0.0
        %326 = vmatprep.subr.mxu0 0.0
        %327 = vmatpush2.msra.mxu0 0.0
        %328 = vmatprep.subr.mxu0 0.0
        %329 = vmatpush2.msra.mxu0 0.0
        %330 = vmatprep.subr.mxu0 0.0
        %331 = vmatpush2.msra.mxu0 0.0
        %332 = vmatprep.subr.mxu0 0.0
        %333 = vmatpush2.msra.mxu0 0.0
        %334 = vmatprep.subr.mxu0 0.0
        %335 = vmatpush2.msra.mxu0 0.0
        %336 = vmatprep.subr.mxu0 0.0
        %337 = vmatpush2.msra.mxu0 0.0
        %338 = vmatprep.subr.mxu0 0.0
        %339 = vmatpush2.msra.mxu0 0.0
        %340 = vmatprep.subr.mxu0 0.0
        %341 = vmatpush2.msra.mxu0 0.0
        %342 = vmatprep.mubr.f32.mxu0 0.0
        %343 = vmatmul.mubr.f32.gmra.mxu0 %v270
        %v344 = vpop.f32.mrf.mxu0
        %v345 = vadd.f32 0.0, %v344
        %v346 = vpop.f32.mrf.mxu0
        %347 = vmatprep.mubr.f32.mxu0 0.0
        %348 = vmatmul.mubr.f32.gmra.mxu0 %v273
        %v349 = vpop.f32.mrf.mxu0
        %v350 = vadd.f32 0.0, %v349
        %v351 = vpop.f32.mrf.mxu0
        %352 = vmatprep.mubr.f32.mxu0 0.0
        %353 = vmatmul.mubr.f32.gmra.mxu0 %v276
        %v354 = vpop.f32.mrf.mxu0
        %v355 = vadd.f32 0.0, %v354
        %v356 = vpop.f32.mrf.mxu0
        %357 = vdwg.mxu0
        %vm358 = vcmask 195584
        %v360 = vsel %vm358, %v250, 0
        %v363 = vsel %vm358, %v251, 0
        %365 = vmatprep.subr.mxu0 0.0
        %366 = vmatpush1.msra.mxu0 0.0
        %367 = vmatprep.subr.mxu0 0.0
        %368 = vmatpush1.msra.mxu0 0.0
        %369 = vmatprep.subr.mxu0 0.0
        %370 = vmatpush1.msra.mxu0 0.0
        %371 = vmatprep.subr.mxu0 0.0
        %372 = vmatpush1.msra.mxu0 0.0
        %373 = vmatprep.subr.mxu0 0.0
        %374 = vmatpush1.msra.mxu0 0.0
        %375 = vmatprep.subr.mxu0 0.0
        %376 = vmatpush1.msra.mxu0 0.0
        %377 = vmatprep.subr.mxu0 0.0
        %378 = vmatpush1.msra.mxu0 0.0
        %379 = vmatprep.subr.mxu0 0.0
        %380 = vmatpush1.msra.mxu0 0.0
        %381 = vmatprep.subr.mxu0 0.0
        %382 = vmatpush1.msra.mxu0 0.0
        %383 = vmatprep.subr.mxu0 0.0
        %384 = vmatpush1.msra.mxu0 0.0
        %385 = vmatprep.subr.mxu0 0.0
        %386 = vmatpush1.msra.mxu0 0.0
        %387 = vmatprep.subr.mxu0 0.0
        %388 = vmatpush1.msra.mxu0 0.0
        %389 = vmatprep.subr.mxu0 0.0
        %390 = vmatpush1.msra.mxu0 0.0
        %391 = vmatprep.subr.mxu0 0.0
        %392 = vmatpush1.msra.mxu0 %v355
        %393 = vmatprep.subr.mxu0 0.0
        %394 = vmatpush1.msra.mxu0 %v350
        %395 = vmatprep.subr.mxu0 0.0
        %396 = vmatpush1.msra.mxu0 %v345
        %397 = vmatprep.subr.mxu0 0.0
        %398 = vmatpush2.msra.mxu0 0.0
        %399 = vmatprep.subr.mxu0 0.0
        %400 = vmatpush2.msra.mxu0 0.0
        %401 = vmatprep.subr.mxu0 0.0
        %402 = vmatpush2.msra.mxu0 0.0
        %403 = vmatprep.subr.mxu0 0.0
        %404 = vmatpush2.msra.mxu0 0.0
        %405 = vmatprep.subr.mxu0 0.0
        %406 = vmatpush2.msra.mxu0 0.0
        %407 = vmatprep.subr.mxu0 0.0
        %408 = vmatpush2.msra.mxu0 0.0
        %409 = vmatprep.subr.mxu0 0.0
        %410 = vmatpush2.msra.mxu0 0.0
        %411 = vmatprep.subr.mxu0 0.0
        %412 = vmatpush2.msra.mxu0 0.0
        %413 = vmatprep.subr.mxu0 0.0
        %414 = vmatpush2.msra.mxu0 0.0
        %415 = vmatprep.subr.mxu0 0.0
        %416 = vmatpush2.msra.mxu0 0.0
        %417 = vmatprep.subr.mxu0 0.0
        %418 = vmatpush2.msra.mxu0 0.0
        %419 = vmatprep.subr.mxu0 0.0
        %420 = vmatpush2.msra.mxu0 0.0
        %421 = vmatprep.subr.mxu0 0.0
        %422 = vmatpush2.msra.mxu0 0.0
        %423 = vmatprep.subr.mxu0 0.0
        %424 = vmatpush2.msra.mxu0 0.0
        %425 = vmatprep.subr.mxu0 0.0
        %426 = vmatpush2.msra.mxu0 0.0
        %427 = vmatprep.subr.mxu0 0.0
        %428 = vmatpush2.msra.mxu0 0.0
        %429 = vmatprep.mubr.f32.mxu0 0.0
        %430 = vmatmul.mubr.f32.gmra.mxu0 %v360
        %v431 = vpop.f32.mrf.mxu0
        %v432 = vadd.f32 0.0, %v431
        %v433 = vpop.f32.mrf.mxu0
        %434 = vmatprep.mubr.f32.mxu0 0.0
        %435 = vmatmul.mubr.f32.gmra.mxu0 %v363
        %v436 = vpop.f32.mrf.mxu0
        %v437 = vadd.f32 0.0, %v436
        %v438 = vpop.f32.mrf.mxu0
        %439 = vdwg.mxu0
        %v440 = vround.ne.pseudo %v432
        %v441 = vround.ne.pseudo %v437
        %v442 = vmax.f32 %v440, 0.0
        %v443 = vmax.f32 %v441, 0.0
        %v444 = vmin.f32 %v442, 255.0
        %v445 = vmin.f32 %v443, 255.0
        %s446 = sld [smem:[#allocation2]]
        %v447 = vstv %s446
        %v448 = vmul.f32 %v444, %v447
        %v449 = vmul.f32 %v445, %v447
        %s450 = sld [smem:[#allocation5]]
        %v451 = vstv %s450
        %v452 = vadd.f32 %v448, %v451
        %v453 = vadd.f32 %v449, %v451
        %vm454 = vcmask 130048
        %455 = vst.msk [vmem:[%s244] sm:$0xff] %vm454, %v452
        %456 = vst.msk [vmem:[%s244 + $0x8] sm:$0xff] %vm454, %v453
        %s457 = scalar_lea.vmem %s249, 6
        %v458 = vld [vmem:[%s457] sm:$0x3]
        %v459 = vld [vmem:[%s457 + $0x2] sm:$0x3]
        %v460 = vld [vmem:[%s457 + $0x4] sm:$0x3]
        %v461 = vunpack.c.0.s8 %v458
        %v462 = vunpack.c.0.s8 %v459
        %v463 = vunpack.c.0.s8 %v460
        %v464 = vand.u32 %v461, 255
        %v465 = vand.u32 %v462, 255
        %v466 = vand.u32 %v463, 255
        %v467 = vcvt.s32.f32 %v464
        %v468 = vcvt.s32.f32 %v465
        %v469 = vcvt.s32.f32 %v466
        %v471 = vsel %vm268, %v467, 0
        %v474 = vsel %vm268, %v468, 0
        %v477 = vsel %vm268, %v469, 0
        %479 = vmatprep.subr.mxu0 0.0
        %480 = vmatpush1.msra.mxu0 0.0
        %481 = vmatprep.subr.mxu0 0.0
        %482 = vmatpush1.msra.mxu0 0.0
        %483 = vmatprep.subr.mxu0 0.0
        %484 = vmatpush1.msra.mxu0 0.0
        %485 = vmatprep.subr.mxu0 0.0
        %486 = vmatpush1.msra.mxu0 0.0
        %487 = vmatprep.subr.mxu0 0.0
        %488 = vmatpush1.msra.mxu0 0.0
        %489 = vmatprep.subr.mxu0 0.0
        %490 = vmatpush1.msra.mxu0 0.0
        %491 = vmatprep.subr.mxu0 0.0
        %492 = vmatpush1.msra.mxu0 0.0
        %493 = vmatprep.subr.mxu0 0.0
        %494 = vmatpush1.msra.mxu0 0.0
        %495 = vmatprep.subr.mxu0 0.0
        %496 = vmatpush1.msra.mxu0 0.0
        %497 = vmatprep.subr.mxu0 0.0
        %498 = vmatpush1.msra.mxu0 0.0
        %499 = vmatprep.subr.mxu0 0.0
        %500 = vmatpush1.msra.mxu0 0.0
        %501 = vmatprep.subr.mxu0 0.0
        %502 = vmatpush1.msra.mxu0 0.0
        %503 = vmatprep.subr.mxu0 0.0
        %504 = vmatpush1.msra.mxu0 %v255
        %505 = vmatprep.subr.mxu0 0.0
        %506 = vmatpush1.msra.mxu0 %v254
        %507 = vmatprep.subr.mxu0 0.0
        %508 = vmatpush1.msra.mxu0 %v253
        %509 = vmatprep.subr.mxu0 0.0
        %510 = vmatpush1.msra.mxu0 %v252
        %511 = vmatprep.subr.mxu0 0.0
        %512 = vmatpush2.msra.mxu0 0.0
        %513 = vmatprep.subr.mxu0 0.0
        %514 = vmatpush2.msra.mxu0 0.0
        %515 = vmatprep.subr.mxu0 0.0
        %516 = vmatpush2.msra.mxu0 0.0
        %517 = vmatprep.subr.mxu0 0.0
        %518 = vmatpush2.msra.mxu0 0.0
        %519 = vmatprep.subr.mxu0 0.0
        %520 = vmatpush2.msra.mxu0 0.0
        %521 = vmatprep.subr.mxu0 0.0
        %522 = vmatpush2.msra.mxu0 0.0
        %523 = vmatprep.subr.mxu0 0.0
        %524 = vmatpush2.msra.mxu0 0.0
        %525 = vmatprep.subr.mxu0 0.0
        %526 = vmatpush2.msra.mxu0 0.0
        %527 = vmatprep.subr.mxu0 0.0
        %528 = vmatpush2.msra.mxu0 0.0
        %529 = vmatprep.subr.mxu0 0.0
        %530 = vmatpush2.msra.mxu0 0.0
        %531 = vmatprep.subr.mxu0 0.0
        %532 = vmatpush2.msra.mxu0 0.0
        %533 = vmatprep.subr.mxu0 0.0
        %534 = vmatpush2.msra.mxu0 0.0
        %535 = vmatprep.subr.mxu0 0.0
        %536 = vmatpush2.msra.mxu0 0.0
        %537 = vmatprep.subr.mxu0 0.0
        %538 = vmatpush2.msra.mxu0 0.0
        %539 = vmatprep.subr.mxu0 0.0
        %540 = vmatpush2.msra.mxu0 0.0
        %541 = vmatprep.subr.mxu0 0.0
        %542 = vmatpush2.msra.mxu0 0.0
        %543 = vmatprep.mubr.f32.mxu0 0.0
        %544 = vmatmul.mubr.f32.gmra.mxu0 %v471
        %v545 = vpop.f32.mrf.mxu0
        %v546 = vadd.f32 0.0, %v545
        %v547 = vpop.f32.mrf.mxu0
        %548 = vmatprep.mubr.f32.mxu0 0.0
        %549 = vmatmul.mubr.f32.gmra.mxu0 %v474
        %v550 = vpop.f32.mrf.mxu0
        %v551 = vadd.f32 0.0, %v550
        %v552 = vpop.f32.mrf.mxu0
        %553 = vmatprep.mubr.f32.mxu0 0.0
        %554 = vmatmul.mubr.f32.gmra.mxu0 %v477
        %v555 = vpop.f32.mrf.mxu0
        %v556 = vadd.f32 0.0, %v555
        %v557 = vpop.f32.mrf.mxu0
        %558 = vdwg.mxu0
        %559 = vmatprep.subr.mxu0 0.0
        %560 = vmatpush1.msra.mxu0 0.0
        %561 = vmatprep.subr.mxu0 0.0
        %562 = vmatpush1.msra.mxu0 0.0
        %563 = vmatprep.subr.mxu0 0.0
        %564 = vmatpush1.msra.mxu0 0.0
        %565 = vmatprep.subr.mxu0 0.0
        %566 = vmatpush1.msra.mxu0 0.0
        %567 = vmatprep.subr.mxu0 0.0
        %568 = vmatpush1.msra.mxu0 0.0
        %569 = vmatprep.subr.mxu0 0.0
        %570 = vmatpush1.msra.mxu0 0.0
        %571 = vmatprep.subr.mxu0 0.0
        %572 = vmatpush1.msra.mxu0 0.0
        %573 = vmatprep.subr.mxu0 0.0
        %574 = vmatpush1.msra.mxu0 0.0
        %575 = vmatprep.subr.mxu0 0.0
        %576 = vmatpush1.msra.mxu0 0.0
        %577 = vmatprep.subr.mxu0 0.0
        %578 = vmatpush1.msra.mxu0 0.0
        %579 = vmatprep.subr.mxu0 0.0
        %580 = vmatpush1.msra.mxu0 0.0
        %581 = vmatprep.subr.mxu0 0.0
        %582 = vmatpush1.msra.mxu0 0.0
        %583 = vmatprep.subr.mxu0 0.0
        %584 = vmatpush1.msra.mxu0 0.0
        %585 = vmatprep.subr.mxu0 0.0
        %586 = vmatpush1.msra.mxu0 %v556
        %587 = vmatprep.subr.mxu0 0.0
        %588 = vmatpush1.msra.mxu0 %v551
        %589 = vmatprep.subr.mxu0 0.0
        %590 = vmatpush1.msra.mxu0 %v546
        %591 = vmatprep.subr.mxu0 0.0
        %592 = vmatpush2.msra.mxu0 0.0
        %593 = vmatprep.subr.mxu0 0.0
        %594 = vmatpush2.msra.mxu0 0.0
        %595 = vmatprep.subr.mxu0 0.0
        %596 = vmatpush2.msra.mxu0 0.0
        %597 = vmatprep.subr.mxu0 0.0
        %598 = vmatpush2.msra.mxu0 0.0
        %599 = vmatprep.subr.mxu0 0.0
        %600 = vmatpush2.msra.mxu0 0.0
        %601 = vmatprep.subr.mxu0 0.0
        %602 = vmatpush2.msra.mxu0 0.0
        %603 = vmatprep.subr.mxu0 0.0
        %604 = vmatpush2.msra.mxu0 0.0
        %605 = vmatprep.subr.mxu0 0.0
        %606 = vmatpush2.msra.mxu0 0.0
        %607 = vmatprep.subr.mxu0 0.0
        %608 = vmatpush2.msra.mxu0 0.0
        %609 = vmatprep.subr.mxu0 0.0
        %610 = vmatpush2.msra.mxu0 0.0
        %611 = vmatprep.subr.mxu0 0.0
        %612 = vmatpush2.msra.mxu0 0.0
        %613 = vmatprep.subr.mxu0 0.0
        %614 = vmatpush2.msra.mxu0 0.0
        %615 = vmatprep.subr.mxu0 0.0
        %616 = vmatpush2.msra.mxu0 0.0
        %617 = vmatprep.subr.mxu0 0.0
        %618 = vmatpush2.msra.mxu0 0.0
        %619 = vmatprep.subr.mxu0 0.0
        %620 = vmatpush2.msra.mxu0 0.0
        %621 = vmatprep.subr.mxu0 0.0
        %622 = vmatpush2.msra.mxu0 0.0
        %623 = vmatprep.mubr.f32.mxu0 0.0
        %624 = vmatmul.mubr.f32.gmra.mxu0 %v360
        %v625 = vpop.f32.mrf.mxu0
        %v626 = vadd.f32 0.0, %v625
        %v627 = vpop.f32.mrf.mxu0
        %628 = vmatprep.mubr.f32.mxu0 0.0
        %629 = vmatmul.mubr.f32.gmra.mxu0 %v363
        %v630 = vpop.f32.mrf.mxu0
        %v631 = vadd.f32 0.0, %v630
        %v632 = vpop.f32.mrf.mxu0
        %633 = vdwg.mxu0
        %v634 = vround.ne.pseudo %v626
        %v635 = vround.ne.pseudo %v631
        %v636 = vmax.f32 %v634, 0.0
        %v637 = vmax.f32 %v635, 0.0
        %v638 = vmin.f32 %v636, 255.0
        %v639 = vmin.f32 %v637, 255.0
        %s640 = sld [smem:[#allocation2 + $0x1]]
        %v641 = vstv %s640
        %v642 = vmul.f32 %v638, %v641
        %v643 = vmul.f32 %v639, %v641
        %s644 = sld [smem:[#allocation5 + $0x1]]
        %v645 = vstv %s644
        %v646 = vadd.f32 %v642, %v645
        %v647 = vadd.f32 %v643, %v645
        %s648 = scalar_lea.vmem %s244, 16 [#allocation7]
        %649 = vst.msk [vmem:[%s648] sm:$0xff] %vm454, %v646
        %650 = vst.msk [vmem:[%s648 + $0x8] sm:$0xff] %vm454, %v647
        %s651 = scalar_lea.vmem %s249, 12
        %v652 = vld [vmem:[%s651] sm:$0x3]
        %v653 = vld [vmem:[%s651 + $0x2] sm:$0x3]
        %v654 = vld [vmem:[%s651 + $0x4] sm:$0x3]
        %v655 = vunpack.c.0.s8 %v652
        %v656 = vunpack.c.0.s8 %v653
        %v657 = vunpack.c.0.s8 %v654
        %v658 = vand.u32 %v655, 255
        %v659 = vand.u32 %v656, 255
        %v660 = vand.u32 %v657, 255
        %v661 = vcvt.s32.f32 %v658
        %v662 = vcvt.s32.f32 %v659
        %v663 = vcvt.s32.f32 %v660
        %v665 = vsel %vm268, %v661, 0
        %v668 = vsel %vm268, %v662, 0
        %v671 = vsel %vm268, %v663, 0
        %673 = vmatprep.subr.mxu0 0.0
        %674 = vmatpush1.msra.mxu0 0.0
        %675 = vmatprep.subr.mxu0 0.0
        %676 = vmatpush1.msra.mxu0 0.0
        %677 = vmatprep.subr.mxu0 0.0
        %678 = vmatpush1.msra.mxu0 0.0
        %679 = vmatprep.subr.mxu0 0.0
        %680 = vmatpush1.msra.mxu0 0.0
        %681 = vmatprep.subr.mxu0 0.0
        %682 = vmatpush1.msra.mxu0 0.0
        %683 = vmatprep.subr.mxu0 0.0
        %684 = vmatpush1.msra.mxu0 0.0
        %685 = vmatprep.subr.mxu0 0.0
        %686 = vmatpush1.msra.mxu0 0.0
        %687 = vmatprep.subr.mxu0 0.0
        %688 = vmatpush1.msra.mxu0 0.0
        %689 = vmatprep.subr.mxu0 0.0
        %690 = vmatpush1.msra.mxu0 0.0
        %691 = vmatprep.subr.mxu0 0.0
        %692 = vmatpush1.msra.mxu0 0.0
        %693 = vmatprep.subr.mxu0 0.0
        %694 = vmatpush1.msra.mxu0 0.0
        %695 = vmatprep.subr.mxu0 0.0
        %696 = vmatpush1.msra.mxu0 0.0
        %697 = vmatprep.subr.mxu0 0.0
        %698 = vmatpush1.msra.mxu0 %v255
        %699 = vmatprep.subr.mxu0 0.0
        %700 = vmatpush1.msra.mxu0 %v254
        %701 = vmatprep.subr.mxu0 0.0
        %702 = vmatpush1.msra.mxu0 %v253
        %703 = vmatprep.subr.mxu0 0.0
        %704 = vmatpush1.msra.mxu0 %v252
        %705 = vmatprep.subr.mxu0 0.0
        %706 = vmatpush2.msra.mxu0 0.0
        %707 = vmatprep.subr.mxu0 0.0
        %708 = vmatpush2.msra.mxu0 0.0
        %709 = vmatprep.subr.mxu0 0.0
        %710 = vmatpush2.msra.mxu0 0.0
        %711 = vmatprep.subr.mxu0 0.0
        %712 = vmatpush2.msra.mxu0 0.0
        %713 = vmatprep.subr.mxu0 0.0
        %714 = vmatpush2.msra.mxu0 0.0
        %715 = vmatprep.subr.mxu0 0.0
        %716 = vmatpush2.msra.mxu0 0.0
        %717 = vmatprep.subr.mxu0 0.0
        %718 = vmatpush2.msra.mxu0 0.0
        %719 = vmatprep.subr.mxu0 0.0
        %720 = vmatpush2.msra.mxu0 0.0
        %721 = vmatprep.subr.mxu0 0.0
        %722 = vmatpush2.msra.mxu0 0.0
        %723 = vmatprep.subr.mxu0 0.0
        %724 = vmatpush2.msra.mxu0 0.0
        %725 = vmatprep.subr.mxu0 0.0
        %726 = vmatpush2.msra.mxu0 0.0
        %727 = vmatprep.subr.mxu0 0.0
        %728 = vmatpush2.msra.mxu0 0.0
        %729 = vmatprep.subr.mxu0 0.0
        %730 = vmatpush2.msra.mxu0 0.0
        %731 = vmatprep.subr.mxu0 0.0
        %732 = vmatpush2.msra.mxu0 0.0
        %733 = vmatprep.subr.mxu0 0.0
        %734 = vmatpush2.msra.mxu0 0.0
        %735 = vmatprep.subr.mxu0 0.0
        %736 = vmatpush2.msra.mxu0 0.0
        %737 = vmatprep.mubr.f32.mxu0 0.0
        %738 = vmatmul.mubr.f32.gmra.mxu0 %v665
        %v739 = vpop.f32.mrf.mxu0
        %v740 = vadd.f32 0.0, %v739
        %v741 = vpop.f32.mrf.mxu0
        %742 = vmatprep.mubr.f32.mxu0 0.0
        %743 = vmatmul.mubr.f32.gmra.mxu0 %v668
        %v744 = vpop.f32.mrf.mxu0
        %v745 = vadd.f32 0.0, %v744
        %v746 = vpop.f32.mrf.mxu0
        %747 = vmatprep.mubr.f32.mxu0 0.0
        %748 = vmatmul.mubr.f32.gmra.mxu0 %v671
        %v749 = vpop.f32.mrf.mxu0
        %v750 = vadd.f32 0.0, %v749
        %v751 = vpop.f32.mrf.mxu0
        %752 = vdwg.mxu0
        %753 = vmatprep.subr.mxu0 0.0
        %754 = vmatpush1.msra.mxu0 0.0
        %755 = vmatprep.subr.mxu0 0.0
        %756 = vmatpush1.msra.mxu0 0.0
        %757 = vmatprep.subr.mxu0 0.0
        %758 = vmatpush1.msra.mxu0 0.0
        %759 = vmatprep.subr.mxu0 0.0
        %760 = vmatpush1.msra.mxu0 0.0
        %761 = vmatprep.subr.mxu0 0.0
        %762 = vmatpush1.msra.mxu0 0.0
        %763 = vmatprep.subr.mxu0 0.0
        %764 = vmatpush1.msra.mxu0 0.0
        %765 = vmatprep.subr.mxu0 0.0
        %766 = vmatpush1.msra.mxu0 0.0
        %767 = vmatprep.subr.mxu0 0.0
        %768 = vmatpush1.msra.mxu0 0.0
        %769 = vmatprep.subr.mxu0 0.0
        %770 = vmatpush1.msra.mxu0 0.0
        %771 = vmatprep.subr.mxu0 0.0
        %772 = vmatpush1.msra.mxu0 0.0
        %773 = vmatprep.subr.mxu0 0.0
        %774 = vmatpush1.msra.mxu0 0.0
        %775 = vmatprep.subr.mxu0 0.0
        %776 = vmatpush1.msra.mxu0 0.0
        %777 = vmatprep.subr.mxu0 0.0
        %778 = vmatpush1.msra.mxu0 0.0
        %779 = vmatprep.subr.mxu0 0.0
        %780 = vmatpush1.msra.mxu0 %v750
        %781 = vmatprep.subr.mxu0 0.0
        %782 = vmatpush1.msra.mxu0 %v745
        %783 = vmatprep.subr.mxu0 0.0
        %784 = vmatpush1.msra.mxu0 %v740
        %785 = vmatprep.subr.mxu0 0.0
        %786 = vmatpush2.msra.mxu0 0.0
        %787 = vmatprep.subr.mxu0 0.0
        %788 = vmatpush2.msra.mxu0 0.0
        %789 = vmatprep.subr.mxu0 0.0
        %790 = vmatpush2.msra.mxu0 0.0
        %791 = vmatprep.subr.mxu0 0.0
        %792 = vmatpush2.msra.mxu0 0.0
        %793 = vmatprep.subr.mxu0 0.0
        %794 = vmatpush2.msra.mxu0 0.0
        %795 = vmatprep.subr.mxu0 0.0
        %796 = vmatpush2.msra.mxu0 0.0
        %797 = vmatprep.subr.mxu0 0.0
        %798 = vmatpush2.msra.mxu0 0.0
        %799 = vmatprep.subr.mxu0 0.0
        %800 = vmatpush2.msra.mxu0 0.0
        %801 = vmatprep.subr.mxu0 0.0
        %802 = vmatpush2.msra.mxu0 0.0
        %803 = vmatprep.subr.mxu0 0.0
        %804 = vmatpush2.msra.mxu0 0.0
        %805 = vmatprep.subr.mxu0 0.0
        %806 = vmatpush2.msra.mxu0 0.0
        %807 = vmatprep.subr.mxu0 0.0
        %808 = vmatpush2.msra.mxu0 0.0
        %809 = vmatprep.subr.mxu0 0.0
        %810 = vmatpush2.msra.mxu0 0.0
        %811 = vmatprep.subr.mxu0 0.0
        %812 = vmatpush2.msra.mxu0 0.0
        %813 = vmatprep.subr.mxu0 0.0
        %814 = vmatpush2.msra.mxu0 0.0
        %815 = vmatprep.subr.mxu0 0.0
        %816 = vmatpush2.msra.mxu0 0.0
        %817 = vmatprep.mubr.f32.mxu0 0.0
        %818 = vmatmul.mubr.f32.gmra.mxu0 %v360
        %v819 = vpop.f32.mrf.mxu0
        %v820 = vadd.f32 0.0, %v819
        %v821 = vpop.f32.mrf.mxu0
        %822 = vmatprep.mubr.f32.mxu0 0.0
        %823 = vmatmul.mubr.f32.gmra.mxu0 %v363
        %v824 = vpop.f32.mrf.mxu0
        %v825 = vadd.f32 0.0, %v824
        %v826 = vpop.f32.mrf.mxu0
        %827 = vdwg.mxu0
        %v828 = vround.ne.pseudo %v820
        %v829 = vround.ne.pseudo %v825
        %v830 = vmax.f32 %v828, 0.0
        %v831 = vmax.f32 %v829, 0.0
        %v832 = vmin.f32 %v830, 255.0
        %v833 = vmin.f32 %v831, 255.0
        %s834 = sld [smem:[#allocation2 + $0x2]]
        %v835 = vstv %s834
        %v836 = vmul.f32 %v832, %v835
        %v837 = vmul.f32 %v833, %v835
        %s838 = sld [smem:[#allocation5 + $0x2]]
        %v839 = vstv %s838
        %v840 = vadd.f32 %v836, %v839
        %v841 = vadd.f32 %v837, %v839
        %s842 = scalar_lea.vmem %s244, 32 [#allocation7]
        %843 = vst.msk [vmem:[%s842] sm:$0xff] %vm454, %v840
        %844 = vst.msk [vmem:[%s842 + $0x8] sm:$0xff] %vm454, %v841
        %s845 = sand.u32 %s139, 1
        %s846 = scalar_lea.sflag [#allocation3], %s845
        %s847 = sand.u32 %s139, 1
        %s848 = smul.addr %s847, 48
        %s849 = scalar_lea.vmem [#allocation7], %s848
        // Predicated region
        $region49: #{tpu_custom_call.1} parent=39 // pred_check
          %p850 = pneg %p149
        $region50: #{tpu_custom_call.1} parent=39 // pred_check_branch
          %852 = sbr.rel (%p850) target = $region52
        $region51: #{tpu_custom_call.1} parent=39 // pred_region
          %s854 = ssub.s32 768, 768
          %855 = vsyncadd %s846, %s854
          %s856 = smul.addr %s21, 6
          %s857 = smul.addr %s856, 128
          %s858 = scalar_lea.hbm %s5, %s857
          %s859 = sshll.u32 %s849, 4
          %s860 = int_to_ptr.vmem [resolvable:$true] %s859
          %865 = dma.vmem_to_hbm [thread:$0]  %s860, 768, %s858, %s846, 128, 128, 8
        $region52: #{tpu_custom_call.1} parent=39 // pred_fallthru
          _
      $region40: #{tpu_custom_call.1} parent=5 // pred_fallthru
        _
      %p866 = scmp.le.s32.totalorder 2, %s16
      // Predicated region
      $region53: #{tpu_custom_call.1} parent=5 // pred_check
        %p867 = pneg %p866
      $region54: #{tpu_custom_call.1} parent=5 // pred_check_branch
        %869 = sbr.rel (%p867) target = $region56
      $region55: #{tpu_custom_call.1} parent=5 // pred_region
        %s870 = ssub.s32 %s16, 2
        // Predicated region
        $region57: #{tpu_custom_call.1} parent=55 // pred_check
          %p871 = pneg %p155
        $region58: #{tpu_custom_call.1} parent=55 // pred_check_branch
          %873 = sbr.rel (%p871) target = $region60
        $region59: #{tpu_custom_call.1} parent=55 // pred_region
          %s874 = sand.u32 %s140, 1
          %s875 = scalar_lea.sflag [#allocation3], %s874
          %s876 = sand.u32 %s140, 1
          %s877 = smul.addr %s876, 48
          %s878 = scalar_lea.vmem [#allocation7], %s877
          %879 = dma.done %s875, 768
        $region60: #{tpu_custom_call.1} parent=55 // pred_fallthru
          _
      $region56: #{tpu_custom_call.1} parent=5 // pred_fallthru
        _
    $region6: #{tpu_custom_call.1} parent=1 // loop_footer
      %s20 = sadd.s32 1, %s16
    $region7: #{tpu_custom_call.1} parent=1 // loop_footer_branch
      %15 = sbr.rel target = $region3
    $region8: #{tpu_custom_call.1} parent=1 // loop_exit
      _
    %880 = vsyncpa [#allocation3], 1
    %s881 = scalar_lea.sflag [#allocation3], 1
    %882 = vsyncpa %s881, 1
    %883 = vsyncpa [#allocation4], 1
    %s884 = scalar_lea.sflag [#allocation4], 1
    %885 = vsyncpa %s884, 1
    %886 = vsyncpa [#allocation6], 1

</llo_original>
